<compile_context>
chip_gen: v7x
topology: tpu7x:2x2x1
jax: 0.10.0
libtpu: 0.0.40
codegen_flags: <defaults>
</compile_context>

<pallas_src>
import jax
import jax.numpy as jnp
from jax.experimental import pallas as pl
from jax.experimental.pallas import tpu as pltpu


def _actor_kernel(xT_ref, w1_ref, b1_ref, w2_ref, b2_ref, outT_ref):
    # Feature-major shapes (single grid step, whole batch resident):
    #   xT_ref:  (S, B)    w1_ref: (H, S)  b1_ref: (H, 1)
    #   w2_ref:  (A, H)    b2_ref: (A, 1)  outT_ref: (A, B)
    xT = xT_ref[...]
    w1 = w1_ref[...]
    w2 = w2_ref[...]

    s_dim, b_dim = xT_ref.shape
    h_dim = w1_ref.shape[0]
    a_dim = w2_ref.shape[0]

    # Hidden layer: hT = relu(W1 @ xT + b1), shape (H, B).
    # K = S is tiny (4), so unrolled VPU broadcast-FMAs beat MXU fill/drain.
    hT = jnp.broadcast_to(b1_ref[...], (h_dim, b_dim))
    for k in range(s_dim):
        hT = hT + w1[:, k:k + 1] * xT[k:k + 1, :]
    hT = jnp.maximum(hT, 0.0)

    # Output layer: lT = W2 @ hT + b2, shape (A, B).  K = H = 16, same trick.
    lT = jnp.broadcast_to(b2_ref[...], (a_dim, b_dim))
    for j in range(h_dim):
        lT = lT + w2[:, j:j + 1] * hT[j:j + 1, :]

    if a_dim == 2:
        # Exactly-normalized softmax for two actions: one EUP exp, no
        # cross-sublane reduction, no approximate reciprocal.
        d = lT[0:1, :] - lT[1:2, :]
        p0 = 1.0 / (1.0 + jnp.exp(-d))          # softmax(l)[0]
        outT_ref[0:1, :] = p0.astype(outT_ref.dtype)
        outT_ref[1:2, :] = (1.0 - p0).astype(outT_ref.dtype)
    else:
        # General numerically-stable softmax over the action (sublane) axis,
        # exact division for the normalization.
        m = jnp.max(lT, axis=0, keepdims=True)
        e = jnp.exp(lT - m)
        denom = jnp.sum(e, axis=0, keepdims=True)
        outT_ref[...] = (e / denom).astype(outT_ref.dtype)


@jax.jit
def actor_forward(state, w_hidden, b_hidden, w_logits, b_logits):
    """Actor forward pass as a single Pallas kernel.

    Args:
      state:    (B, state_size) float32
      w_hidden: (16, state_size) float32  -- PyTorch Linear weight layout
      b_hidden: (16,)            float32
      w_logits: (n_actions, 16)  float32
      b_logits: (n_actions,)     float32
    Returns:
      (B, n_actions) float32 action probabilities (rows sum to 1).
    """
    B, state_size = state.shape
    h_dim = w_hidden.shape[0]
    n_actions = w_logits.shape[0]

    # Feature-major kernel inputs; under jit this glue folds into the dispatch.
    xT = state.astype(jnp.float32).T                       # (S, B)
    w1 = w_hidden.astype(jnp.float32)                      # (H, S)
    b1 = b_hidden.astype(jnp.float32).reshape(h_dim, 1)    # (H, 1)
    w2 = w_logits.astype(jnp.float32)                      # (A, H)
    b2 = b_logits.astype(jnp.float32).reshape(n_actions, 1)  # (A, 1)

    # Single grid step: the whole batch fits in VMEM trivially on every
    # generation (KiB-scale).  Every block equals the full array, so the
    # (8,128) divisibility rule is satisfied for any B / state_size / A.
    # TODO(synk): for B in the many-thousands on v7x, tile B over a
    # core-parallel grid axis to use both TensorCores.
    outT = pl.pallas_call(
        _actor_kernel,
        out_shape=jax.ShapeDtypeStruct((n_actions, B), jnp.float32),
        grid=(1,),
        in_specs=[
            pl.BlockSpec((state_size, B), lambda i: (0, 0)),
            pl.BlockSpec((h_dim, state_size), lambda i: (0, 0)),
            pl.BlockSpec((h_dim, 1), lambda i: (0, 0)),
            pl.BlockSpec((n_actions, h_dim), lambda i: (0, 0)),
            pl.BlockSpec((n_actions, 1), lambda i: (0, 0)),
        ],
        out_specs=pl.BlockSpec((n_actions, B), lambda i: (0, 0)),
        compiler_params=pltpu.CompilerParams(
            dimension_semantics=("arbitrary",),
        ),
    )(xT, w1, b1, w2, b2)

    return outT.T  # (B, n_actions), matching the PyTorch module's output.


def _init_params(key, n_actions, state_size):
    """Deterministic init mimicking nn.Linear default uniform(-1/sqrt(fan_in), ...)."""
    k1, k2, k3, k4 = jax.random.split(key, 4)
    bound1 = 1.0 / jnp.sqrt(state_size)
    bound2 = 1.0 / jnp.sqrt(16.0)
    w_hidden = jax.random.uniform(k1, (16, state_size), jnp.float32, -bound1, bound1)
    b_hidden = jax.random.uniform(k2, (16,), jnp.float32, -bound1, bound1)
    w_logits = jax.random.uniform(k3, (n_actions, 16), jnp.float32, -bound2, bound2)
    b_logits = jax.random.uniform(k4, (n_actions,), jnp.float32, -bound2, bound2)
    return w_hidden, b_hidden, w_logits, b_logits


if __name__ == "__main__":
    # CartPole-like shapes: state_size=4, n_actions=2, batch=256 (multiple of
    # 128 so the lane axis of the feature-major layout is fully dense).
    batch = 256
    state_size = 4
    n_actions = 2

    key = jax.random.PRNGKey(0)
    k_params, k_state = jax.random.split(key)
    w_hidden, b_hidden, w_logits, b_logits = _init_params(k_params, n_actions, state_size)
    state = jax.random.normal(k_state, (batch, state_size), jnp.float32)

    probs = actor_forward(state, w_hidden, b_hidden, w_logits, b_logits)
    probs = jax.block_until_ready(probs)

    # Reference in plain JAX with HIGHEST-precision dots (default TPU matmul
    # precision would otherwise dominate the comparison error).
    hp = jax.lax.Precision.HIGHEST
    ref_h = jnp.maximum(jnp.dot(state, w_hidden.T, precision=hp) + b_hidden, 0.0)
    ref_logits = jnp.dot(ref_h, w_logits.T, precision=hp) + b_logits
    ref = jax.nn.softmax(ref_logits, axis=-1)

    assert probs.shape == (batch, n_actions)
    assert jnp.allclose(probs, ref, atol=1e-5, rtol=1e-5), (
        float(jnp.max(jnp.abs(probs - ref)))
    )
    assert jnp.allclose(jnp.sum(probs, axis=-1), 1.0, atol=1e-6)

    print("KERNEL_OK")
</pallas_src>

<mosaic_0001>
module attributes {stable_mosaic.version = 11 : i64} {
  func.func @_actor_kernel(%arg0: i32, %arg1: memref<4x256xf32, #tpu.memory_space<vmem>>, %arg2: memref<16x4xf32, #tpu.memory_space<vmem>>, %arg3: memref<16x1xf32, #tpu.memory_space<vmem>>, %arg4: memref<2x16xf32, #tpu.memory_space<vmem>>, %arg5: memref<2x1xf32, #tpu.memory_space<vmem>>, %arg6: memref<2x256xf32, #tpu.memory_space<vmem>>) attributes {dimension_semantics = [#tpu.dimension_semantics<arbitrary>], iteration_bounds = array<i64: 1>, scalar_prefetch = 0 : i64, scratch_operands = 0 : i64, tpu.core_type = #tpu.core_type<tc>, window_params = [{pipeline_mode = #tpu.pipeline_mode<synchronous>, transform_indices = @transform_0, window_bounds = array<i64: 4, 256>}, {pipeline_mode = #tpu.pipeline_mode<synchronous>, transform_indices = @transform_1, window_bounds = array<i64: 16, 4>}, {pipeline_mode = #tpu.pipeline_mode<synchronous>, transform_indices = @transform_2, window_bounds = array<i64: 16, 1>}, {pipeline_mode = #tpu.pipeline_mode<synchronous>, transform_indices = @transform_3, window_bounds = array<i64: 2, 16>}, {pipeline_mode = #tpu.pipeline_mode<synchronous>, transform_indices = @transform_4, window_bounds = array<i64: 2, 1>}, {pipeline_mode = #tpu.pipeline_mode<synchronous>, transform_indices = @transform_5, window_bounds = array<i64: 2, 256>}]} {
    %c0 = arith.constant 0 : index
    %c0_0 = arith.constant 0 : index
    %0 = vector.load %arg1[%c0, %c0_0] : memref<4x256xf32, #tpu.memory_space<vmem>>, vector<4x256xf32>
    %c0_1 = arith.constant 0 : index
    %c0_2 = arith.constant 0 : index
    %1 = vector.load %arg2[%c0_1, %c0_2] : memref<16x4xf32, #tpu.memory_space<vmem>>, vector<16x4xf32>
    %c0_3 = arith.constant 0 : index
    %c0_4 = arith.constant 0 : index
    %2 = vector.load %arg4[%c0_3, %c0_4] : memref<2x16xf32, #tpu.memory_space<vmem>>, vector<2x16xf32>
    %c0_5 = arith.constant 0 : index
    %c0_6 = arith.constant 0 : index
    %3 = vector.load %arg3[%c0_5, %c0_6] : memref<16x1xf32, #tpu.memory_space<vmem>>, vector<16x1xf32>
    %4 = vector.shape_cast %3 : vector<16x1xf32> to vector<16x1xf32>
    %5 = vector.broadcast %4 : vector<16x1xf32> to vector<16x256xf32>
    %6 = vector.extract_strided_slice %1 {offsets = [0, 0], sizes = [16, 1], strides = [1, 1]} : vector<16x4xf32> to vector<16x1xf32>
    %7 = vector.extract_strided_slice %0 {offsets = [0, 0], sizes = [1, 256], strides = [1, 1]} : vector<4x256xf32> to vector<1x256xf32>
    %8 = vector.broadcast %6 : vector<16x1xf32> to vector<16x256xf32>
    %9 = vector.broadcast %7 : vector<1x256xf32> to vector<16x256xf32>
    %10 = arith.mulf %8, %9 : vector<16x256xf32>
    %11 = arith.addf %5, %10 : vector<16x256xf32>
    %12 = vector.extract_strided_slice %1 {offsets = [0, 1], sizes = [16, 1], strides = [1, 1]} : vector<16x4xf32> to vector<16x1xf32>
    %13 = vector.extract_strided_slice %0 {offsets = [1, 0], sizes = [1, 256], strides = [1, 1]} : vector<4x256xf32> to vector<1x256xf32>
    %14 = vector.broadcast %12 : vector<16x1xf32> to vector<16x256xf32>
    %15 = vector.broadcast %13 : vector<1x256xf32> to vector<16x256xf32>
    %16 = arith.mulf %14, %15 : vector<16x256xf32>
    %17 = arith.addf %11, %16 : vector<16x256xf32>
    %18 = vector.extract_strided_slice %1 {offsets = [0, 2], sizes = [16, 1], strides = [1, 1]} : vector<16x4xf32> to vector<16x1xf32>
    %19 = vector.extract_strided_slice %0 {offsets = [2, 0], sizes = [1, 256], strides = [1, 1]} : vector<4x256xf32> to vector<1x256xf32>
    %20 = vector.broadcast %18 : vector<16x1xf32> to vector<16x256xf32>
    %21 = vector.broadcast %19 : vector<1x256xf32> to vector<16x256xf32>
    %22 = arith.mulf %20, %21 : vector<16x256xf32>
    %23 = arith.addf %17, %22 : vector<16x256xf32>
    %24 = vector.extract_strided_slice %1 {offsets = [0, 3], sizes = [16, 1], strides = [1, 1]} : vector<16x4xf32> to vector<16x1xf32>
    %25 = vector.extract_strided_slice %0 {offsets = [3, 0], sizes = [1, 256], strides = [1, 1]} : vector<4x256xf32> to vector<1x256xf32>
    %26 = vector.broadcast %24 : vector<16x1xf32> to vector<16x256xf32>
    %27 = vector.broadcast %25 : vector<1x256xf32> to vector<16x256xf32>
    %28 = arith.mulf %26, %27 : vector<16x256xf32>
    %29 = arith.addf %23, %28 : vector<16x256xf32>
    %cst = arith.constant 0.000000e+00 : f32
    %30 = vector.broadcast %cst : f32 to vector<16x256xf32>
    %31 = arith.maximumf %29, %30 : vector<16x256xf32>
    %c0_7 = arith.constant 0 : index
    %c0_8 = arith.constant 0 : index
    %32 = vector.load %arg5[%c0_7, %c0_8] : memref<2x1xf32, #tpu.memory_space<vmem>>, vector<2x1xf32>
    %33 = vector.shape_cast %32 : vector<2x1xf32> to vector<2x1xf32>
    %34 = vector.broadcast %33 : vector<2x1xf32> to vector<2x256xf32>
    %35 = vector.extract_strided_slice %2 {offsets = [0, 0], sizes = [2, 1], strides = [1, 1]} : vector<2x16xf32> to vector<2x1xf32>
    %36 = vector.extract_strided_slice %31 {offsets = [0, 0], sizes = [1, 256], strides = [1, 1]} : vector<16x256xf32> to vector<1x256xf32>
    %37 = vector.broadcast %35 : vector<2x1xf32> to vector<2x256xf32>
    %38 = vector.broadcast %36 : vector<1x256xf32> to vector<2x256xf32>
    %39 = arith.mulf %37, %38 : vector<2x256xf32>
    %40 = arith.addf %34, %39 : vector<2x256xf32>
    %41 = vector.extract_strided_slice %2 {offsets = [0, 1], sizes = [2, 1], strides = [1, 1]} : vector<2x16xf32> to vector<2x1xf32>
    %42 = vector.extract_strided_slice %31 {offsets = [1, 0], sizes = [1, 256], strides = [1, 1]} : vector<16x256xf32> to vector<1x256xf32>
    %43 = vector.broadcast %41 : vector<2x1xf32> to vector<2x256xf32>
    %44 = vector.broadcast %42 : vector<1x256xf32> to vector<2x256xf32>
    %45 = arith.mulf %43, %44 : vector<2x256xf32>
    %46 = arith.addf %40, %45 : vector<2x256xf32>
    %47 = vector.extract_strided_slice %2 {offsets = [0, 2], sizes = [2, 1], strides = [1, 1]} : vector<2x16xf32> to vector<2x1xf32>
    %48 = vector.extract_strided_slice %31 {offsets = [2, 0], sizes = [1, 256], strides = [1, 1]} : vector<16x256xf32> to vector<1x256xf32>
    %49 = vector.broadcast %47 : vector<2x1xf32> to vector<2x256xf32>
    %50 = vector.broadcast %48 : vector<1x256xf32> to vector<2x256xf32>
    %51 = arith.mulf %49, %50 : vector<2x256xf32>
    %52 = arith.addf %46, %51 : vector<2x256xf32>
    %53 = vector.extract_strided_slice %2 {offsets = [0, 3], sizes = [2, 1], strides = [1, 1]} : vector<2x16xf32> to vector<2x1xf32>
    %54 = vector.extract_strided_slice %31 {offsets = [3, 0], sizes = [1, 256], strides = [1, 1]} : vector<16x256xf32> to vector<1x256xf32>
    %55 = vector.broadcast %53 : vector<2x1xf32> to vector<2x256xf32>
    %56 = vector.broadcast %54 : vector<1x256xf32> to vector<2x256xf32>
    %57 = arith.mulf %55, %56 : vector<2x256xf32>
    %58 = arith.addf %52, %57 : vector<2x256xf32>
    %59 = vector.extract_strided_slice %2 {offsets = [0, 4], sizes = [2, 1], strides = [1, 1]} : vector<2x16xf32> to vector<2x1xf32>
    %60 = vector.extract_strided_slice %31 {offsets = [4, 0], sizes = [1, 256], strides = [1, 1]} : vector<16x256xf32> to vector<1x256xf32>
    %61 = vector.broadcast %59 : vector<2x1xf32> to vector<2x256xf32>
    %62 = vector.broadcast %60 : vector<1x256xf32> to vector<2x256xf32>
    %63 = arith.mulf %61, %62 : vector<2x256xf32>
    %64 = arith.addf %58, %63 : vector<2x256xf32>
    %65 = vector.extract_strided_slice %2 {offsets = [0, 5], sizes = [2, 1], strides = [1, 1]} : vector<2x16xf32> to vector<2x1xf32>
    %66 = vector.extract_strided_slice %31 {offsets = [5, 0], sizes = [1, 256], strides = [1, 1]} : vector<16x256xf32> to vector<1x256xf32>
    %67 = vector.broadcast %65 : vector<2x1xf32> to vector<2x256xf32>
    %68 = vector.broadcast %66 : vector<1x256xf32> to vector<2x256xf32>
    %69 = arith.mulf %67, %68 : vector<2x256xf32>
    %70 = arith.addf %64, %69 : vector<2x256xf32>
    %71 = vector.extract_strided_slice %2 {offsets = [0, 6], sizes = [2, 1], strides = [1, 1]} : vector<2x16xf32> to vector<2x1xf32>
    %72 = vector.extract_strided_slice %31 {offsets = [6, 0], sizes = [1, 256], strides = [1, 1]} : vector<16x256xf32> to vector<1x256xf32>
    %73 = vector.broadcast %71 : vector<2x1xf32> to vector<2x256xf32>
    %74 = vector.broadcast %72 : vector<1x256xf32> to vector<2x256xf32>
    %75 = arith.mulf %73, %74 : vector<2x256xf32>
    %76 = arith.addf %70, %75 : vector<2x256xf32>
    %77 = vector.extract_strided_slice %2 {offsets = [0, 7], sizes = [2, 1], strides = [1, 1]} : vector<2x16xf32> to vector<2x1xf32>
    %78 = vector.extract_strided_slice %31 {offsets = [7, 0], sizes = [1, 256], strides = [1, 1]} : vector<16x256xf32> to vector<1x256xf32>
    %79 = vector.broadcast %77 : vector<2x1xf32> to vector<2x256xf32>
    %80 = vector.broadcast %78 : vector<1x256xf32> to vector<2x256xf32>
    %81 = arith.mulf %79, %80 : vector<2x256xf32>
    %82 = arith.addf %76, %81 : vector<2x256xf32>
    %83 = vector.extract_strided_slice %2 {offsets = [0, 8], sizes = [2, 1], strides = [1, 1]} : vector<2x16xf32> to vector<2x1xf32>
    %84 = vector.extract_strided_slice %31 {offsets = [8, 0], sizes = [1, 256], strides = [1, 1]} : vector<16x256xf32> to vector<1x256xf32>
    %85 = vector.broadcast %83 : vector<2x1xf32> to vector<2x256xf32>
    %86 = vector.broadcast %84 : vector<1x256xf32> to vector<2x256xf32>
    %87 = arith.mulf %85, %86 : vector<2x256xf32>
    %88 = arith.addf %82, %87 : vector<2x256xf32>
    %89 = vector.extract_strided_slice %2 {offsets = [0, 9], sizes = [2, 1], strides = [1, 1]} : vector<2x16xf32> to vector<2x1xf32>
    %90 = vector.extract_strided_slice %31 {offsets = [9, 0], sizes = [1, 256], strides = [1, 1]} : vector<16x256xf32> to vector<1x256xf32>
    %91 = vector.broadcast %89 : vector<2x1xf32> to vector<2x256xf32>
    %92 = vector.broadcast %90 : vector<1x256xf32> to vector<2x256xf32>
    %93 = arith.mulf %91, %92 : vector<2x256xf32>
    %94 = arith.addf %88, %93 : vector<2x256xf32>
    %95 = vector.extract_strided_slice %2 {offsets = [0, 10], sizes = [2, 1], strides = [1, 1]} : vector<2x16xf32> to vector<2x1xf32>
    %96 = vector.extract_strided_slice %31 {offsets = [10, 0], sizes = [1, 256], strides = [1, 1]} : vector<16x256xf32> to vector<1x256xf32>
    %97 = vector.broadcast %95 : vector<2x1xf32> to vector<2x256xf32>
    %98 = vector.broadcast %96 : vector<1x256xf32> to vector<2x256xf32>
    %99 = arith.mulf %97, %98 : vector<2x256xf32>
    %100 = arith.addf %94, %99 : vector<2x256xf32>
    %101 = vector.extract_strided_slice %2 {offsets = [0, 11], sizes = [2, 1], strides = [1, 1]} : vector<2x16xf32> to vector<2x1xf32>
    %102 = vector.extract_strided_slice %31 {offsets = [11, 0], sizes = [1, 256], strides = [1, 1]} : vector<16x256xf32> to vector<1x256xf32>
    %103 = vector.broadcast %101 : vector<2x1xf32> to vector<2x256xf32>
    %104 = vector.broadcast %102 : vector<1x256xf32> to vector<2x256xf32>
    %105 = arith.mulf %103, %104 : vector<2x256xf32>
    %106 = arith.addf %100, %105 : vector<2x256xf32>
    %107 = vector.extract_strided_slice %2 {offsets = [0, 12], sizes = [2, 1], strides = [1, 1]} : vector<2x16xf32> to vector<2x1xf32>
    %108 = vector.extract_strided_slice %31 {offsets = [12, 0], sizes = [1, 256], strides = [1, 1]} : vector<16x256xf32> to vector<1x256xf32>
    %109 = vector.broadcast %107 : vector<2x1xf32> to vector<2x256xf32>
    %110 = vector.broadcast %108 : vector<1x256xf32> to vector<2x256xf32>
    %111 = arith.mulf %109, %110 : vector<2x256xf32>
    %112 = arith.addf %106, %111 : vector<2x256xf32>
    %113 = vector.extract_strided_slice %2 {offsets = [0, 13], sizes = [2, 1], strides = [1, 1]} : vector<2x16xf32> to vector<2x1xf32>
    %114 = vector.extract_strided_slice %31 {offsets = [13, 0], sizes = [1, 256], strides = [1, 1]} : vector<16x256xf32> to vector<1x256xf32>
    %115 = vector.broadcast %113 : vector<2x1xf32> to vector<2x256xf32>
    %116 = vector.broadcast %114 : vector<1x256xf32> to vector<2x256xf32>
    %117 = arith.mulf %115, %116 : vector<2x256xf32>
    %118 = arith.addf %112, %117 : vector<2x256xf32>
    %119 = vector.extract_strided_slice %2 {offsets = [0, 14], sizes = [2, 1], strides = [1, 1]} : vector<2x16xf32> to vector<2x1xf32>
    %120 = vector.extract_strided_slice %31 {offsets = [14, 0], sizes = [1, 256], strides = [1, 1]} : vector<16x256xf32> to vector<1x256xf32>
    %121 = vector.broadcast %119 : vector<2x1xf32> to vector<2x256xf32>
    %122 = vector.broadcast %120 : vector<1x256xf32> to vector<2x256xf32>
    %123 = arith.mulf %121, %122 : vector<2x256xf32>
    %124 = arith.addf %118, %123 : vector<2x256xf32>
    %125 = vector.extract_strided_slice %2 {offsets = [0, 15], sizes = [2, 1], strides = [1, 1]} : vector<2x16xf32> to vector<2x1xf32>
    %126 = vector.extract_strided_slice %31 {offsets = [15, 0], sizes = [1, 256], strides = [1, 1]} : vector<16x256xf32> to vector<1x256xf32>
    %127 = vector.broadcast %125 : vector<2x1xf32> to vector<2x256xf32>
    %128 = vector.broadcast %126 : vector<1x256xf32> to vector<2x256xf32>
    %129 = arith.mulf %127, %128 : vector<2x256xf32>
    %130 = arith.addf %124, %129 : vector<2x256xf32>
    %131 = vector.extract_strided_slice %130 {offsets = [0, 0], sizes = [1, 256], strides = [1, 1]} : vector<2x256xf32> to vector<1x256xf32>
    %132 = vector.extract_strided_slice %130 {offsets = [1, 0], sizes = [1, 256], strides = [1, 1]} : vector<2x256xf32> to vector<1x256xf32>
    %133 = arith.subf %131, %132 : vector<1x256xf32>
    %cst_9 = arith.constant 0.000000e+00 : f32
    %134 = vector.broadcast %cst_9 : f32 to vector<1x256xf32>
    %135 = arith.subf %134, %133 : vector<1x256xf32>
    %136 = math.exp %135 : vector<1x256xf32>
    %cst_10 = arith.constant 1.000000e+00 : f32
    %137 = vector.broadcast %cst_10 : f32 to vector<1x256xf32>
    %138 = arith.addf %137, %136 : vector<1x256xf32>
    %cst_11 = arith.constant 1.000000e+00 : f32
    %139 = vector.broadcast %cst_11 : f32 to vector<1x256xf32>
    %140 = arith.divf %139, %138 : vector<1x256xf32>
    %c0_12 = arith.constant 0 : index
    %c0_13 = arith.constant 0 : index
    %141 = vector.load %arg6[%c0_12, %c0_13] : memref<2x256xf32, #tpu.memory_space<vmem>>, vector<1x256xf32>
    tpu.vector_store %arg6[%c0_12, %c0_13], %140 {strides = array<i32>} : memref<2x256xf32, #tpu.memory_space<vmem>>, vector<1x256xf32>,
    %cst_14 = arith.constant 1.000000e+00 : f32
    %142 = vector.broadcast %cst_14 : f32 to vector<1x256xf32>
    %143 = arith.subf %142, %140 : vector<1x256xf32>
    %c1 = arith.constant 1 : index
    %c0_15 = arith.constant 0 : index
    %144 = vector.load %arg6[%c1, %c0_15] : memref<2x256xf32, #tpu.memory_space<vmem>>, vector<1x256xf32>
    tpu.vector_store %arg6[%c1, %c0_15], %143 {strides = array<i32>} : memref<2x256xf32, #tpu.memory_space<vmem>>, vector<1x256xf32>,
    return
  }
  func.func @transform_0(%arg0: i32) -> (i32, i32) {
    %c0_i32 = arith.constant 0 : i32
    %c0_i32_0 = arith.constant 0 : i32
    %c0_i32_1 = arith.constant 0 : i32
    return %c0_i32, %c0_i32_0 : i32, i32
  }
  func.func @transform_1(%arg0: i32) -> (i32, i32) {
    %c0_i32 = arith.constant 0 : i32
    %c0_i32_0 = arith.constant 0 : i32
    %c0_i32_1 = arith.constant 0 : i32
    return %c0_i32, %c0_i32_0 : i32, i32
  }
  func.func @transform_2(%arg0: i32) -> (i32, i32) {
    %c0_i32 = arith.constant 0 : i32
    %c0_i32_0 = arith.constant 0 : i32
    %c0_i32_1 = arith.constant 0 : i32
    return %c0_i32, %c0_i32_0 : i32, i32
  }
  func.func @transform_3(%arg0: i32) -> (i32, i32) {
    %c0_i32 = arith.constant 0 : i32
    %c0_i32_0 = arith.constant 0 : i32
    %c0_i32_1 = arith.constant 0 : i32
    return %c0_i32, %c0_i32_0 : i32, i32
  }
  func.func @transform_4(%arg0: i32) -> (i32, i32) {
    %c0_i32 = arith.constant 0 : i32
    %c0_i32_0 = arith.constant 0 : i32
    %c0_i32_1 = arith.constant 0 : i32
    return %c0_i32, %c0_i32_0 : i32, i32
  }
  func.func @transform_5(%arg0: i32) -> (i32, i32) {
    %c0_i32 = arith.constant 0 : i32
    %c0_i32_0 = arith.constant 0 : i32
    %c0_i32_1 = arith.constant 0 : i32
    return %c0_i32, %c0_i32_0 : i32, i32
  }
}

</mosaic_0001>

<llo_original>
// kernel: actor_forward.1
$region0: #{actor_forward.1}
  #allocation0 [shape = 'u32[]', space=smem, size = 0x4, offset = 0x4, fixed_abs, tag = 'smem constant byte address 0x4 - core index']
  #allocation1 [shape = 'u32[144,128]{1,0:T(1,128)}', space=vmem, size = 0x12000, scoped, tag = 'internal scratch']
  %s0 = inlined_call_operand.vmem [shape: f32[4,256], index: 0, kind: input, shape index: {}]
  %s1 = inlined_call_operand.vmem [shape: f32[16,4], index: 1, kind: input, shape index: {}]
  %s2 = inlined_call_operand.vmem [shape: f32[16,1], index: 2, kind: input, shape index: {}]
  %s3 = inlined_call_operand.vmem [shape: f32[2,16], index: 3, kind: input, shape index: {}]
  %s4 = inlined_call_operand.vmem [shape: f32[2,1], index: 4, kind: input, shape index: {}]
  %s5 = inlined_call_operand.hbm [shape: f32[2,256], index: 5, kind: output, shape index: {}]
  %s6 = sld [smem:[#allocation0]]
  $region30: #{actor_forward.1} parent=0
    _
  %s8 = ssub.s32 1, %s6
  %s9 = scalar_select 0, %s8, %s6
  $region1: #{actor_forward.1} parent=0
    #allocation2 [shape = 'u8[2048]{0}', space=vmem, size = 0x800, scoped, tag = 'output window, operand 0, single buffered']
    #allocation3 [shape = 's32[1]{0}', space=sflag, size = 0x4, scoped, tag = 'scoped memory for actor_forward.1']
    %10 = vsyncpa [#allocation3], 0
    // Predicated region
    $region2: #{actor_forward.1} parent=1 // pred_check
      _
    $region3: #{actor_forward.1} parent=1 // pred_check_branch
      %12 = sbr.rel (0) target = $region5
    $region4: #{actor_forward.1} parent=1 // pred_region
      _
    $region5: #{actor_forward.1} parent=1 // pred_fallthru
      _
    // Predicated region
    $region6: #{actor_forward.1} parent=1 // pred_check
      _
    $region7: #{actor_forward.1} parent=1 // pred_check_branch
      %14 = sbr.rel (0) target = $region9
    $region8: #{actor_forward.1} parent=1 // pred_region
      _
    $region9: #{actor_forward.1} parent=1 // pred_fallthru
      _
    // Predicated region
    $region10: #{actor_forward.1} parent=1 // pred_check
      _
    $region11: #{actor_forward.1} parent=1 // pred_check_branch
      %16 = sbr.rel (0) target = $region13
    $region12: #{actor_forward.1} parent=1 // pred_region
      _
    $region13: #{actor_forward.1} parent=1 // pred_fallthru
      _
    // Predicated region
    $region14: #{actor_forward.1} parent=1 // pred_check
      _
    $region15: #{actor_forward.1} parent=1 // pred_check_branch
      %18 = sbr.rel (0) target = $region17
    $region16: #{actor_forward.1} parent=1 // pred_region
      _
    $region17: #{actor_forward.1} parent=1 // pred_fallthru
      _
    // Predicated region
    $region18: #{actor_forward.1} parent=1 // pred_check
      _
    $region19: #{actor_forward.1} parent=1 // pred_check_branch
      %20 = sbr.rel (0) target = $region21
    $region20: #{actor_forward.1} parent=1 // pred_region
      _
    $region21: #{actor_forward.1} parent=1 // pred_fallthru
      _
    %v21 = vld [vmem:[%s0] sm:$0xff]
    %v22 = vld [vmem:[%s1] sm:$0xff]
    %v23 = vld [vmem:[%s1 + $0x8] sm:$0xff]
    %v24 = vld [vmem:[%s3] sm:$0x3]
    %v25 = vld [vmem:[%s2] sm:$0xff]
    %v26 = vld [vmem:[%s2 + $0x8] sm:$0xff]
    %28 = vset.pattern.permute.xlu0 0
    %29 = vperm.xlu0 %28, %v25
    %v30 = vpop.permute.xlu0 %29
    %33 = vset.pattern.permute.xlu0 0
    %34 = vperm.xlu0 %33, %v26
    %v35 = vpop.permute.xlu0 %34
    %38 = vset.pattern.permute.xlu0 0
    %39 = vperm.xlu0 %38, %v22
    %v40 = vpop.permute.xlu0 %39
    %43 = vset.pattern.permute.xlu0 0
    %44 = vperm.xlu0 %43, %v23
    %v45 = vpop.permute.xlu0 %44
    %v48 = vlaneseq
    %v49 = vshrl.u32 %v48, 7
    %v50 = vsub.s32 0, %v49
    %v51 = vrot.slane %v21, %v50
    %v52 = vlaneseq
    %v53 = vshrl.u32 %v52, 7
    %v54 = vsub.s32 4, %v53
    %v55 = vrot.slane %v21, %v54
    %v58 = vlaneseq
    %v59 = vshrl.u32 %v58, 7
    %v60 = vsub.s32 0, %v59
    %v61 = vrot.slane %v51, %v60
    %v62 = vlaneseq
    %v63 = vshrl.u32 %v62, 7
    %v64 = vsub.s32 0, %v63
    %v65 = vrot.slane %v55, %v64
    %v66 = vmul.f32 %v40, %v61
    %v67 = vmul.f32 %v40, %v65
    %v68 = vmul.f32 %v45, %v61
    %v69 = vmul.f32 %v45, %v65
    %v70 = vadd.f32 %v30, %v66
    %v71 = vadd.f32 %v30, %v67
    %v72 = vadd.f32 %v35, %v68
    %v73 = vadd.f32 %v35, %v69
    %74 = vset.pattern.permute.xlu0 1
    %75 = vperm.xlu0 %74, %v22
    %v76 = vpop.permute.xlu0 %75
    %78 = vset.pattern.permute.xlu0 1
    %79 = vperm.xlu0 %78, %v23
    %v80 = vpop.permute.xlu0 %79
    %v82 = vlaneseq
    %v83 = vshrl.u32 %v82, 7
    %v84 = vsub.s32 1, %v83
    %v85 = vrot.slane %v21, %v84
    %v86 = vlaneseq
    %v87 = vshrl.u32 %v86, 7
    %v88 = vsub.s32 5, %v87
    %v89 = vrot.slane %v21, %v88
    %v92 = vlaneseq
    %v93 = vshrl.u32 %v92, 7
    %v94 = vsub.s32 1, %v93
    %v95 = vrot.slane %v85, %v94
    %v96 = vlaneseq
    %v97 = vshrl.u32 %v96, 7
    %v98 = vsub.s32 1, %v97
    %v99 = vrot.slane %v89, %v98
    %v100 = vmul.f32 %v76, %v95
    %v101 = vmul.f32 %v76, %v99
    %v102 = vmul.f32 %v80, %v95
    %v103 = vmul.f32 %v80, %v99
    %v104 = vadd.f32 %v70, %v100
    %v105 = vadd.f32 %v71, %v101
    %v106 = vadd.f32 %v72, %v102
    %v107 = vadd.f32 %v73, %v103
    %108 = vset.pattern.permute.xlu0 2
    %109 = vperm.xlu0 %108, %v22
    %v110 = vpop.permute.xlu0 %109
    %112 = vset.pattern.permute.xlu0 2
    %113 = vperm.xlu0 %112, %v23
    %v114 = vpop.permute.xlu0 %113
    %v116 = vlaneseq
    %v117 = vshrl.u32 %v116, 7
    %v118 = vsub.s32 2, %v117
    %v119 = vrot.slane %v21, %v118
    %v120 = vlaneseq
    %v121 = vshrl.u32 %v120, 7
    %v122 = vsub.s32 6, %v121
    %v123 = vrot.slane %v21, %v122
    %v126 = vlaneseq
    %v127 = vshrl.u32 %v126, 7
    %v128 = vsub.s32 2, %v127
    %v129 = vrot.slane %v119, %v128
    %v130 = vlaneseq
    %v131 = vshrl.u32 %v130, 7
    %v132 = vsub.s32 2, %v131
    %v133 = vrot.slane %v123, %v132
    %v134 = vmul.f32 %v110, %v129
    %v135 = vmul.f32 %v110, %v133
    %v136 = vmul.f32 %v114, %v129
    %v137 = vmul.f32 %v114, %v133
    %v138 = vadd.f32 %v104, %v134
    %v139 = vadd.f32 %v105, %v135
    %v140 = vadd.f32 %v106, %v136
    %v141 = vadd.f32 %v107, %v137
    %142 = vset.pattern.permute.xlu0 3
    %143 = vperm.xlu0 %142, %v22
    %v144 = vpop.permute.xlu0 %143
    %146 = vset.pattern.permute.xlu0 3
    %147 = vperm.xlu0 %146, %v23
    %v148 = vpop.permute.xlu0 %147
    %v150 = vlaneseq
    %v151 = vshrl.u32 %v150, 7
    %v152 = vsub.s32 3, %v151
    %v153 = vrot.slane %v21, %v152
    %v154 = vlaneseq
    %v155 = vshrl.u32 %v154, 7
    %v156 = vsub.s32 7, %v155
    %v157 = vrot.slane %v21, %v156
    %v160 = vlaneseq
    %v161 = vshrl.u32 %v160, 7
    %v162 = vsub.s32 3, %v161
    %v163 = vrot.slane %v153, %v162
    %v164 = vlaneseq
    %v165 = vshrl.u32 %v164, 7
    %v166 = vsub.s32 3, %v165
    %v167 = vrot.slane %v157, %v166
    %v168 = vmul.f32 %v144, %v163
    %v169 = vmul.f32 %v144, %v167
    %v170 = vmul.f32 %v148, %v163
    %v171 = vmul.f32 %v148, %v167
    %v172 = vadd.f32 %v138, %v168
    %v173 = vadd.f32 %v139, %v169
    %v174 = vadd.f32 %v140, %v170
    %v175 = vadd.f32 %v141, %v171
    %v176 = vmax.f32 %v172, 0.0
    %v177 = vmax.f32 %v173, 0.0
    %v178 = vmax.f32 %v174, 0.0
    %v179 = vmax.f32 %v175, 0.0
    %v180 = vld [vmem:[%s4] sm:$0x3]
    %182 = vset.pattern.permute.xlu0 0
    %183 = vperm.xlu0 %182, %v180
    %v184 = vpop.permute.xlu0 %183
    %187 = vset.pattern.permute.xlu0 0
    %188 = vperm.xlu0 %187, %v24
    %v189 = vpop.permute.xlu0 %188
    %v191 = vlaneseq
    %v192 = vshrl.u32 %v191, 7
    %v193 = vsub.s32 0, %v192
    %v194 = vrot.slane %v176, %v193
    %v195 = vlaneseq
    %v196 = vshrl.u32 %v195, 7
    %v197 = vsub.s32 0, %v196
    %v198 = vrot.slane %v177, %v197
    %v199 = vmul.f32 %v189, %v194
    %v200 = vmul.f32 %v189, %v198
    %v201 = vadd.f32 %v184, %v199
    %v202 = vadd.f32 %v184, %v200
    %203 = vset.pattern.permute.xlu0 1
    %204 = vperm.xlu0 %203, %v24
    %v205 = vpop.permute.xlu0 %204
    %v207 = vlaneseq
    %v208 = vshrl.u32 %v207, 7
    %v209 = vsub.s32 1, %v208
    %v210 = vrot.slane %v176, %v209
    %v211 = vlaneseq
    %v212 = vshrl.u32 %v211, 7
    %v213 = vsub.s32 1, %v212
    %v214 = vrot.slane %v177, %v213
    %v215 = vmul.f32 %v205, %v210
    %v216 = vmul.f32 %v205, %v214
    %v217 = vadd.f32 %v201, %v215
    %v218 = vadd.f32 %v202, %v216
    %219 = vset.pattern.permute.xlu0 2
    %220 = vperm.xlu0 %219, %v24
    %v221 = vpop.permute.xlu0 %220
    %v223 = vlaneseq
    %v224 = vshrl.u32 %v223, 7
    %v225 = vsub.s32 2, %v224
    %v226 = vrot.slane %v176, %v225
    %v227 = vlaneseq
    %v228 = vshrl.u32 %v227, 7
    %v229 = vsub.s32 2, %v228
    %v230 = vrot.slane %v177, %v229
    %v231 = vmul.f32 %v221, %v226
    %v232 = vmul.f32 %v221, %v230
    %v233 = vadd.f32 %v217, %v231
    %v234 = vadd.f32 %v218, %v232
    %235 = vset.pattern.permute.xlu0 3
    %236 = vperm.xlu0 %235, %v24
    %v237 = vpop.permute.xlu0 %236
    %v239 = vlaneseq
    %v240 = vshrl.u32 %v239, 7
    %v241 = vsub.s32 3, %v240
    %v242 = vrot.slane %v176, %v241
    %v243 = vlaneseq
    %v244 = vshrl.u32 %v243, 7
    %v245 = vsub.s32 3, %v244
    %v246 = vrot.slane %v177, %v245
    %v247 = vmul.f32 %v237, %v242
    %v248 = vmul.f32 %v237, %v246
    %v249 = vadd.f32 %v233, %v247
    %v250 = vadd.f32 %v234, %v248
    %251 = vset.pattern.permute.xlu0 4
    %252 = vperm.xlu0 %251, %v24
    %v253 = vpop.permute.xlu0 %252
    %v255 = vlaneseq
    %v256 = vshrl.u32 %v255, 7
    %v257 = vsub.s32 4, %v256
    %v258 = vrot.slane %v176, %v257
    %v259 = vlaneseq
    %v260 = vshrl.u32 %v259, 7
    %v261 = vsub.s32 4, %v260
    %v262 = vrot.slane %v177, %v261
    %v263 = vmul.f32 %v253, %v258
    %v264 = vmul.f32 %v253, %v262
    %v265 = vadd.f32 %v249, %v263
    %v266 = vadd.f32 %v250, %v264
    %267 = vset.pattern.permute.xlu0 5
    %268 = vperm.xlu0 %267, %v24
    %v269 = vpop.permute.xlu0 %268
    %v271 = vlaneseq
    %v272 = vshrl.u32 %v271, 7
    %v273 = vsub.s32 5, %v272
    %v274 = vrot.slane %v176, %v273
    %v275 = vlaneseq
    %v276 = vshrl.u32 %v275, 7
    %v277 = vsub.s32 5, %v276
    %v278 = vrot.slane %v177, %v277
    %v279 = vmul.f32 %v269, %v274
    %v280 = vmul.f32 %v269, %v278
    %v281 = vadd.f32 %v265, %v279
    %v282 = vadd.f32 %v266, %v280
    %283 = vset.pattern.permute.xlu0 6
    %284 = vperm.xlu0 %283, %v24
    %v285 = vpop.permute.xlu0 %284
    %v287 = vlaneseq
    %v288 = vshrl.u32 %v287, 7
    %v289 = vsub.s32 6, %v288
    %v290 = vrot.slane %v176, %v289
    %v291 = vlaneseq
    %v292 = vshrl.u32 %v291, 7
    %v293 = vsub.s32 6, %v292
    %v294 = vrot.slane %v177, %v293
    %v295 = vmul.f32 %v285, %v290
    %v296 = vmul.f32 %v285, %v294
    %v297 = vadd.f32 %v281, %v295
    %v298 = vadd.f32 %v282, %v296
    %299 = vset.pattern.permute.xlu0 7
    %300 = vperm.xlu0 %299, %v24
    %v301 = vpop.permute.xlu0 %300
    %v303 = vlaneseq
    %v304 = vshrl.u32 %v303, 7
    %v305 = vsub.s32 7, %v304
    %v306 = vrot.slane %v176, %v305
    %v307 = vlaneseq
    %v308 = vshrl.u32 %v307, 7
    %v309 = vsub.s32 7, %v308
    %v310 = vrot.slane %v177, %v309
    %v311 = vmul.f32 %v301, %v306
    %v312 = vmul.f32 %v301, %v310
    %v313 = vadd.f32 %v297, %v311
    %v314 = vadd.f32 %v298, %v312
    %315 = vset.pattern.permute.xlu0 8
    %316 = vperm.xlu0 %315, %v24
    %v317 = vpop.permute.xlu0 %316
    %v319 = vlaneseq
    %v320 = vshrl.u32 %v319, 7
    %v321 = vsub.s32 0, %v320
    %v322 = vrot.slane %v178, %v321
    %v323 = vlaneseq
    %v324 = vshrl.u32 %v323, 7
    %v325 = vsub.s32 0, %v324
    %v326 = vrot.slane %v179, %v325
    %v327 = vmul.f32 %v317, %v322
    %v328 = vmul.f32 %v317, %v326
    %v329 = vadd.f32 %v313, %v327
    %v330 = vadd.f32 %v314, %v328
    %331 = vset.pattern.permute.xlu0 9
    %332 = vperm.xlu0 %331, %v24
    %v333 = vpop.permute.xlu0 %332
    %v335 = vlaneseq
    %v336 = vshrl.u32 %v335, 7
    %v337 = vsub.s32 1, %v336
    %v338 = vrot.slane %v178, %v337
    %v339 = vlaneseq
    %v340 = vshrl.u32 %v339, 7
    %v341 = vsub.s32 1, %v340
    %v342 = vrot.slane %v179, %v341
    %v343 = vmul.f32 %v333, %v338
    %v344 = vmul.f32 %v333, %v342
    %v345 = vadd.f32 %v329, %v343
    %v346 = vadd.f32 %v330, %v344
    %347 = vset.pattern.permute.xlu0 10
    %348 = vperm.xlu0 %347, %v24
    %v349 = vpop.permute.xlu0 %348
    %v351 = vlaneseq
    %v352 = vshrl.u32 %v351, 7
    %v353 = vsub.s32 2, %v352
    %v354 = vrot.slane %v178, %v353
    %v355 = vlaneseq
    %v356 = vshrl.u32 %v355, 7
    %v357 = vsub.s32 2, %v356
    %v358 = vrot.slane %v179, %v357
    %v359 = vmul.f32 %v349, %v354
    %v360 = vmul.f32 %v349, %v358
    %v361 = vadd.f32 %v345, %v359
    %v362 = vadd.f32 %v346, %v360
    %363 = vset.pattern.permute.xlu0 11
    %364 = vperm.xlu0 %363, %v24
    %v365 = vpop.permute.xlu0 %364
    %v367 = vlaneseq
    %v368 = vshrl.u32 %v367, 7
    %v369 = vsub.s32 3, %v368
    %v370 = vrot.slane %v178, %v369
    %v371 = vlaneseq
    %v372 = vshrl.u32 %v371, 7
    %v373 = vsub.s32 3, %v372
    %v374 = vrot.slane %v179, %v373
    %v375 = vmul.f32 %v365, %v370
    %v376 = vmul.f32 %v365, %v374
    %v377 = vadd.f32 %v361, %v375
    %v378 = vadd.f32 %v362, %v376
    %379 = vset.pattern.permute.xlu0 12
    %380 = vperm.xlu0 %379, %v24
    %v381 = vpop.permute.xlu0 %380
    %v383 = vlaneseq
    %v384 = vshrl.u32 %v383, 7
    %v385 = vsub.s32 4, %v384
    %v386 = vrot.slane %v178, %v385
    %v387 = vlaneseq
    %v388 = vshrl.u32 %v387, 7
    %v389 = vsub.s32 4, %v388
    %v390 = vrot.slane %v179, %v389
    %v391 = vmul.f32 %v381, %v386
    %v392 = vmul.f32 %v381, %v390
    %v393 = vadd.f32 %v377, %v391
    %v394 = vadd.f32 %v378, %v392
    %395 = vset.pattern.permute.xlu0 13
    %396 = vperm.xlu0 %395, %v24
    %v397 = vpop.permute.xlu0 %396
    %v399 = vlaneseq
    %v400 = vshrl.u32 %v399, 7
    %v401 = vsub.s32 5, %v400
    %v402 = vrot.slane %v178, %v401
    %v403 = vlaneseq
    %v404 = vshrl.u32 %v403, 7
    %v405 = vsub.s32 5, %v404
    %v406 = vrot.slane %v179, %v405
    %v407 = vmul.f32 %v397, %v402
    %v408 = vmul.f32 %v397, %v406
    %v409 = vadd.f32 %v393, %v407
    %v410 = vadd.f32 %v394, %v408
    %411 = vset.pattern.permute.xlu0 14
    %412 = vperm.xlu0 %411, %v24
    %v413 = vpop.permute.xlu0 %412
    %v415 = vlaneseq
    %v416 = vshrl.u32 %v415, 7
    %v417 = vsub.s32 6, %v416
    %v418 = vrot.slane %v178, %v417
    %v419 = vlaneseq
    %v420 = vshrl.u32 %v419, 7
    %v421 = vsub.s32 6, %v420
    %v422 = vrot.slane %v179, %v421
    %v423 = vmul.f32 %v413, %v418
    %v424 = vmul.f32 %v413, %v422
    %v425 = vadd.f32 %v409, %v423
    %v426 = vadd.f32 %v410, %v424
    %427 = vset.pattern.permute.xlu0 15
    %428 = vperm.xlu0 %427, %v24
    %v429 = vpop.permute.xlu0 %428
    %v431 = vlaneseq
    %v432 = vshrl.u32 %v431, 7
    %v433 = vsub.s32 7, %v432
    %v434 = vrot.slane %v178, %v433
    %v435 = vlaneseq
    %v436 = vshrl.u32 %v435, 7
    %v437 = vsub.s32 7, %v436
    %v438 = vrot.slane %v179, %v437
    %v439 = vmul.f32 %v429, %v434
    %v440 = vmul.f32 %v429, %v438
    %v441 = vadd.f32 %v425, %v439
    %v442 = vadd.f32 %v426, %v440
    %v445 = vrot.slane %v441, 1
    %v446 = vrot.slane %v442, 1
    %v449 = vsub.f32 %v441, %v445
    %v450 = vsub.f32 %v442, %v446
    %v451 = vsub.f32 0.0, %v449
    %v452 = vsub.f32 0.0, %v450
    %v453 = vmul.f32 %v451, 1.442695
    %v454 = vpow.pop %v453
    %v455 = vmul.f32 %v452, 1.442695
    %v456 = vpow.pop %v455
    %v457 = vadd.f32 %v454, 1.0
    %v458 = vadd.f32 %v456, 1.0
    %v459 = vrcp.pop %v457
    %v460 = vmul.f32 1.0, %v459
    %v461 = vrcp.pop %v458
    %v462 = vmul.f32 1.0, %v461
    %v465 = vcombine.low %v460, %v462
    %v467 = vunpack.c.l.s4 1966171168
    %v468 = vunpack.c.0.s8 %v467
    %v469 = vlaneseq
    %v470 = vshrl.u32 %v469, 7
    %v471 = vsub.s32 %v468, %v470
    %v472 = vrot.slane %v465, %v471
    %v474 = vunpack.c.l.s4 1966171168
    %v475 = vunpack.c.0.s8 %v474
    %v476 = vlaneseq
    %v477 = vshrl.u32 %v476, 7
    %v478 = vsub.s32 %v475, %v477
    %v479 = vrot.slane %v472, %v478
    %v481 = vlaneseq
    %vm482 = vcmp.ge.s32.totalorder %v481, 0
    %vm483 = vcmp.lt.s32.totalorder %v481, 256
    %vm484 = vmand %vm482, %vm483
    %485 = vst.msk [vmem:[#allocation2] ss:$2 sm:$0x3] %vm484, %v479
    %v486 = vsub.f32 1.0, %v460
    %v487 = vsub.f32 1.0, %v462
    %v490 = vcombine.low %v486, %v487
    %v492 = vunpack.c.l.s4 1966171168
    %v493 = vunpack.c.0.s8 %v492
    %v494 = vlaneseq
    %v495 = vshrl.u32 %v494, 7
    %v496 = vsub.s32 %v493, %v495
    %v497 = vrot.slane %v490, %v496
    %v499 = vunpack.c.l.s4 1966171168
    %v500 = vunpack.c.0.s8 %v499
    %v501 = vlaneseq
    %v502 = vshrl.u32 %v501, 7
    %v503 = vsub.s32 %v500, %v502
    %v504 = vrot.slane %v497, %v503
    %s506 = scalar_lea.vmem [#allocation2], 1
    %507 = vst.msk [vmem:[%s506] ss:$2 sm:$0x3] %vm484, %v504
    // Predicated region
    $region22: #{actor_forward.1} parent=1 // pred_check
      _
    $region23: #{actor_forward.1} parent=1 // pred_check_branch
      %509 = sbr.rel (0) target = $region25
    $region24: #{actor_forward.1} parent=1 // pred_region
      %s511 = ssub.s32 64, 64
      %512 = vsyncadd [#allocation3], %s511
      %s514 = sshll.u32 [#allocation2], 4
      %s515 = int_to_ptr.vmem [resolvable:$true] %s514
      %517 = dma.vmem_to_hbm [thread:$0]  %s515, 64, %s5, [#allocation3]
    $region25: #{actor_forward.1} parent=1 // pred_fallthru
      _
    // Predicated region
    $region26: #{actor_forward.1} parent=1 // pred_check
      _
    $region27: #{actor_forward.1} parent=1 // pred_check_branch
      %519 = sbr.rel (0) target = $region29
    $region28: #{actor_forward.1} parent=1 // pred_region
      %520 = dma.done [#allocation3], 64
    $region29: #{actor_forward.1} parent=1 // pred_fallthru
      _
    %521 = vsyncpa [#allocation3], 1

</llo_original>
